<compile_context>
chip_gen: v7x
topology: tpu7x:2x2x1
jax: 0.10.0
libtpu: 0.0.40
codegen_flags: <defaults>
</compile_context>

<pallas_src>
import jax
import jax.numpy as jnp
from jax.experimental import pallas as pl
from jax.experimental.pallas import tpu as pltpu


def _round_up(x, m):
    return (x + m - 1) // m * m


def _choose_tn(n_padded):
    """Generation-aware output (N) tile width; n_padded is a multiple of 128."""
    try:
        kind = jax.devices()[0].device_kind.lower()
    except Exception:
        kind = ""
    if "v6" in kind and n_padded % 256 == 0:
        # v6e: one TensorCore with a 2x256^2 MXU -> 256-wide tiles fill the MXU
        # and (for N=256) collapse the grid to a single step.
        return 256
    # v5e: 4x128^2 MXU -> 128 is the natural width.
    # v7x: keep tn=128 so the "parallel" N axis has >=2 tiles to shard across
    #      its 2 TensorCores (tn=256 / single-core is the alternative to
    #      benchmark for tiny batches).
    return 128


def prepare_merge_params(weight, bias, k_imgs, *, param_dtype=jnp.bfloat16):
    """One-time (init-time) parameter prep -- NOT part of the forward path.

    weight: (N, K1+K2) in PyTorch nn.Linear layout; bias: (N,);
    k_imgs = K1 = C*H*W (the concat boundary).

    The weight is split at the concat boundary and pre-transposed to (K, N) so
    the forward pass never concatenates/pads activations; N is zero-padded to a
    multiple of 128 so output stores are lane-dense (unmasked vst).

    param_dtype: bf16 halves weight HBM traffic (f32 MXU accumulation is kept in
    the kernel); pass jnp.float32 for exact f32 parity with the PyTorch Linear
    -- at MergeBlock-test-sized weights the extra bytes are negligible.
    """
    n_out, k_total = weight.shape
    if not (0 < k_imgs < k_total):
        raise ValueError(f"k_imgs={k_imgs} must split the weight's K={k_total}")
    n_pad = _round_up(n_out, 128)
    wt = jnp.transpose(weight)                         # (K, N)
    if n_pad != n_out:
        wt = jnp.pad(wt, ((0, 0), (0, n_pad - n_out)))  # padded cols are sliced off
    w1 = wt[:k_imgs].astype(param_dtype)               # (K1, Np)
    w2 = wt[k_imgs:].astype(param_dtype)               # (K2, Np)
    b = bias.astype(jnp.float32)
    if n_pad != n_out:
        b = jnp.pad(b, (0, n_pad - n_out))
    return w1, w2, b.reshape(1, n_pad)


def _merge_kernel(x1_ref, x2_ref, w1_ref, w2_ref, b_ref, o_ref):
    """Fused concat->Linear->ReLU:  o = relu(x1 @ W1 + x2 @ W2 + b).

    No-reduction fast path: the full K contraction happens in this single grid
    step, so there is no f32 scratch accumulator and no init/epilogue pl.when
    phases -- the MXU result is biased, ReLU'd and stored directly.
    """
    # In-kernel cast (VPU) instead of a separate wrapper-side astype HBM pass.
    x1 = x1_ref[...].astype(w1_ref.dtype)
    x2 = x2_ref[...].astype(w2_ref.dtype)
    acc = jnp.dot(x1, w1_ref[...], preferred_element_type=jnp.float32)
    acc = acc + jnp.dot(x2, w2_ref[...], preferred_element_type=jnp.float32)
    acc = acc + b_ref[...]                 # (1, tn) broadcasts over batch rows
    o_ref[...] = jnp.maximum(acc, 0.0).astype(o_ref.dtype)


def merge_block_forward(imgs, series, w1, w2, bias2d, out_dtype=None):
    """imgs: (B,C,H,W), series: (B,T,D); w1/w2/bias2d from prepare_merge_params.

    out_dtype defaults to imgs.dtype (module parity); pass jnp.bfloat16 to halve
    output writeback bytes if the downstream block consumes bf16.
    """
    B, C, H, W = imgs.shape
    _, T, D = series.shape
    K1, K2 = C * H * W, T * D
    N = K1                                  # MergeBlock's Linear maps back to hidden_imgs_in
    if w1.shape[0] != K1 or w2.shape[0] != K2:
        raise ValueError(
            f"prepared weights expect (K1={w1.shape[0]}, K2={w2.shape[0]}) but the "
            f"activations imply (K1={K1}, K2={K2}); re-run prepare_merge_params "
            f"with k_imgs={K1} for these input shapes.")
    Np = w1.shape[1]
    if bias2d.shape != (1, Np):
        raise ValueError(f"bias2d must be (1, {Np}), got {bias2d.shape}")
    out_dtype = imgs.dtype if out_dtype is None else out_dtype

    tn = _choose_tn(Np)
    grid = (Np // tn,)                      # single "parallel" axis over N tiles

    # Batch handling: a block whose sublane dim equals the full array dim is
    # always legal, so tiny batches (<= 8) skip the wrapper pad op entirely.
    # Once B is non-trivial, pad to the sublane-pack width (16 for bf16, 8 for
    # f32) so every vreg / MXU LHS push is full.
    pack = 16 if w1.dtype == jnp.bfloat16 else 8
    x1 = imgs.reshape(B, K1)                # 'b c h w -> b (c h w)'  (free reshape)
    x2 = series.reshape(B, K2)              # 'b t d   -> b (t d)'
    if B % pack == 0 or B <= 8:
        Bp = B
    else:
        Bp = _round_up(B, pack)
        x1 = jnp.pad(x1, ((0, Bp - B), (0, 0)))
        x2 = jnp.pad(x2, ((0, Bp - B), (0, 0)))

    # VMEM footprint (double-buffered weight tiles + resident activations) is
    # well under the default scoped-VMEM limit on v5e/v6e/v7x -> no
    # vmem_limit_bytes override.
    # TODO(synk): add a K-reduction grid axis + f32 scratch fallback if K1+K2
    # ever grows past the VMEM weight-tile budget (not needed at MergeBlock's
    # real sizes, where the whole K fits comfortably).
    out = pl.pallas_call(
        _merge_kernel,
        out_shape=jax.ShapeDtypeStruct((Bp, Np), out_dtype),
        grid_spec=pltpu.PrefetchScalarGridSpec(
            num_scalar_prefetch=0,
            grid=grid,
            in_specs=[
                pl.BlockSpec((Bp, K1), lambda j: (0, 0)),   # imgs_flat (resident)
                pl.BlockSpec((Bp, K2), lambda j: (0, 0)),   # series_flat (resident)
                pl.BlockSpec((K1, tn), lambda j: (0, j)),   # W1 tile
                pl.BlockSpec((K2, tn), lambda j: (0, j)),   # W2 tile
                pl.BlockSpec((1, tn), lambda j: (0, j)),    # bias tile (f32)
            ],
            out_specs=pl.BlockSpec((Bp, tn), lambda j: (0, j)),
        ),
        compiler_params=pltpu.CompilerParams(
            dimension_semantics=("parallel",),   # N tiles are independent (megacore on v7x)
        ),
    )(x1, x2, w1, w2, bias2d)

    if Bp != B or Np != N:
        out = out[:B, :N]
    # 'b (c h w) -> b c h w'
    return out.reshape(B, C, H, W)


if __name__ == "__main__":
    # Small shapes consistent with the module:
    #   in_channels=4, h=8, w=8  -> hidden_imgs_in   = 4*8*8 = 256
    #   series: t=8, d=16        -> hidden_series_in = 8*16  = 128
    B, C, H, W = 2, 4, 8, 8
    T, D = 8, 16
    K1, K2 = C * H * W, T * D      # 256, 128
    N = K1                         # Linear(hidden_imgs_in + hidden_series_in, hidden_imgs_in)

    key = jax.random.PRNGKey(0)
    k_imgs, k_series, k_w, k_b = jax.random.split(key, 4)

    imgs = jax.random.normal(k_imgs, (B, C, H, W), dtype=jnp.float32)
    series = jax.random.normal(k_series, (B, T, D), dtype=jnp.float32)

    # Deterministic parameter init (PyTorch nn.Linear layout: weight (N, K), bias (N,))
    bound = 1.0 / jnp.sqrt(jnp.float32(K1 + K2))
    weight = jax.random.uniform(k_w, (N, K1 + K2), dtype=jnp.float32,
                                minval=-bound, maxval=bound)
    bias = jax.random.uniform(k_b, (N,), dtype=jnp.float32,
                              minval=-bound, maxval=bound)

    # One-time parameter prep (init-time; outside the forward / jit path).
    w1, w2, bias2d = prepare_merge_params(weight, bias, K1)

    fwd = jax.jit(merge_block_forward)
    out = jax.block_until_ready(fwd(imgs, series, w1, w2, bias2d))
    assert out.shape == (B, C, H, W)

    # Tight reference: same bf16-cast operands, f32 accumulation (matches the kernel path).
    x_cat = jnp.concatenate([imgs.reshape(B, K1), series.reshape(B, K2)], axis=1)
    x_bf = x_cat.astype(jnp.bfloat16).astype(jnp.float32)
    w_bf = weight.astype(jnp.bfloat16).astype(jnp.float32)
    ref_bf = jnp.maximum(x_bf @ w_bf.T + bias, 0.0).reshape(B, C, H, W)
    assert jnp.allclose(out, ref_bf, atol=1e-3, rtol=1e-3), "mismatch vs bf16 reference"

    # Loose sanity check against the full-precision module semantics.
    ref_f32 = jnp.maximum(x_cat @ weight.T + bias, 0.0).reshape(B, C, H, W)
    assert jnp.allclose(out, ref_f32, atol=1e-1, rtol=1e-1), "mismatch vs f32 reference"

    print("KERNEL_OK")
</pallas_src>

<mosaic_0001>
module attributes {stable_mosaic.version = 11 : i64} {
  func.func @_merge_kernel(%arg0: i32, %arg1: memref<2x256xf32, #tpu.memory_space<vmem>>, %arg2: memref<2x128xf32, #tpu.memory_space<vmem>>, %arg3: memref<256x128xbf16, #tpu.memory_space<vmem>>, %arg4: memref<128x128xbf16, #tpu.memory_space<vmem>>, %arg5: memref<1x128xf32, #tpu.memory_space<vmem>>, %arg6: memref<2x128xf32, #tpu.memory_space<vmem>>) attributes {dimension_semantics = [#tpu.dimension_semantics<parallel>], iteration_bounds = array<i64: 2>, scalar_prefetch = 0 : i64, scratch_operands = 0 : i64, tpu.core_type = #tpu.core_type<tc>, window_params = [{pipeline_mode = #tpu.pipeline_mode<synchronous>, transform_indices = @transform_0, window_bounds = array<i64: 2, 256>}, {pipeline_mode = #tpu.pipeline_mode<synchronous>, transform_indices = @transform_1, window_bounds = array<i64: 2, 128>}, {transform_indices = @transform_2, window_bounds = array<i64: 256, 128>}, {transform_indices = @transform_3, window_bounds = array<i64: 128, 128>}, {transform_indices = @transform_4, window_bounds = array<i64: 1, 128>}, {transform_indices = @transform_5, window_bounds = array<i64: 2, 128>}]} {
    %c0 = arith.constant 0 : index
    %c0_0 = arith.constant 0 : index
    %0 = vector.load %arg1[%c0, %c0_0] : memref<2x256xf32, #tpu.memory_space<vmem>>, vector<2x256xf32>
    %1 = arith.truncf %0 : vector<2x256xf32> to vector<2x256xbf16>
    %c0_1 = arith.constant 0 : index
    %c0_2 = arith.constant 0 : index
    %2 = vector.load %arg2[%c0_1, %c0_2] : memref<2x128xf32, #tpu.memory_space<vmem>>, vector<2x128xf32>
    %3 = arith.truncf %2 : vector<2x128xf32> to vector<2x128xbf16>
    %c0_3 = arith.constant 0 : index
    %c0_4 = arith.constant 0 : index
    %4 = vector.load %arg3[%c0_3, %c0_4] : memref<256x128xbf16, #tpu.memory_space<vmem>>, vector<256x128xbf16>
    %cst = arith.constant dense<0.000000e+00> : vector<2x128xf32>
    %5 = tpu.matmul %1, %4, %cst {dimension_numbers = #tpu.dot_dimension_numbers<[1], [0], [0], [1], [0, 0, 1, 1], [], []>} : vector<2x256xbf16>, vector<256x128xbf16>, vector<2x128xf32> -> vector<2x128xf32>
    %c0_5 = arith.constant 0 : index
    %c0_6 = arith.constant 0 : index
    %6 = vector.load %arg4[%c0_5, %c0_6] : memref<128x128xbf16, #tpu.memory_space<vmem>>, vector<128x128xbf16>
    %cst_7 = arith.constant dense<0.000000e+00> : vector<2x128xf32>
    %7 = tpu.matmul %3, %6, %cst_7 {dimension_numbers = #tpu.dot_dimension_numbers<[1], [0], [0], [1], [0, 0, 1, 1], [], []>} : vector<2x128xbf16>, vector<128x128xbf16>, vector<2x128xf32> -> vector<2x128xf32>
    %8 = arith.addf %5, %7 : vector<2x128xf32>
    %c0_8 = arith.constant 0 : index
    %c0_9 = arith.constant 0 : index
    %9 = vector.load %arg5[%c0_8, %c0_9] : memref<1x128xf32, #tpu.memory_space<vmem>>, vector<1x128xf32>
    %10 = vector.broadcast %9 : vector<1x128xf32> to vector<2x128xf32>
    %11 = arith.addf %8, %10 : vector<2x128xf32>
    %cst_10 = arith.constant 0.000000e+00 : f32
    %12 = vector.broadcast %cst_10 : f32 to vector<2x128xf32>
    %13 = arith.maximumf %11, %12 : vector<2x128xf32>
    %c0_11 = arith.constant 0 : index
    %c0_12 = arith.constant 0 : index
    %14 = vector.load %arg6[%c0_11, %c0_12] : memref<2x128xf32, #tpu.memory_space<vmem>>, vector<2x128xf32>
    tpu.vector_store %arg6[%c0_11, %c0_12], %13 {strides = array<i32>} : memref<2x128xf32, #tpu.memory_space<vmem>>, vector<2x128xf32>,
    return
  }
  func.func @transform_0(%arg0: i32) -> (i32, i32) {
    %c0_i32 = arith.constant 0 : i32
    %c0_i32_0 = arith.constant 0 : i32
    %c0_i32_1 = arith.constant 0 : i32
    return %c0_i32, %c0_i32_0 : i32, i32
  }
  func.func @transform_1(%arg0: i32) -> (i32, i32) {
    %c0_i32 = arith.constant 0 : i32
    %c0_i32_0 = arith.constant 0 : i32
    %c0_i32_1 = arith.constant 0 : i32
    return %c0_i32, %c0_i32_0 : i32, i32
  }
  func.func @transform_2(%arg0: i32) -> (i32, i32) {
    %c0_i32 = arith.constant 0 : i32
    %c0_i32_0 = arith.constant 0 : i32
    return %c0_i32, %arg0 : i32, i32
  }
  func.func @transform_3(%arg0: i32) -> (i32, i32) {
    %c0_i32 = arith.constant 0 : i32
    %c0_i32_0 = arith.constant 0 : i32
    return %c0_i32, %arg0 : i32, i32
  }
  func.func @transform_4(%arg0: i32) -> (i32, i32) {
    %c0_i32 = arith.constant 0 : i32
    %c0_i32_0 = arith.constant 0 : i32
    return %c0_i32, %arg0 : i32, i32
  }
  func.func @transform_5(%arg0: i32) -> (i32, i32) {
    %c0_i32 = arith.constant 0 : i32
    %c0_i32_0 = arith.constant 0 : i32
    return %c0_i32, %arg0 : i32, i32
  }
}

</mosaic_0001>

<llo_original>
// kernel: merge_block_forward.1
$region0: #{merge_block_forward.1}
  #allocation0 [shape = 'u32[]', space=smem, size = 0x4, offset = 0x4, fixed_abs, tag = 'smem constant byte address 0x4 - core index']
  #allocation1 [shape = 'u32[144,128]{1,0:T(1,128)}', space=vmem, size = 0x12000, scoped, tag = 'internal scratch']
  %s0 = inlined_call_operand.vmem [shape: f32[2,256], index: 0, kind: input, shape index: {}]
  %s1 = inlined_call_operand.vmem [shape: f32[2,128], index: 1, kind: input, shape index: {}]
  %s2 = inlined_call_operand.hbm [shape: bf16[256,256], index: 2, kind: input, shape index: {}]
  %s3 = inlined_call_operand.hbm [shape: bf16[128,256], index: 3, kind: input, shape index: {}]
  %s4 = inlined_call_operand.vmem [shape: f32[1,256], index: 4, kind: input, shape index: {}]
  %s5 = inlined_call_operand.vmem [shape: f32[2,256], index: 5, kind: output, shape index: {}]
  %s6 = sld [smem:[#allocation0]]
  $region61: #{merge_block_forward.1} parent=0
    _
  %s8 = ssub.s32 1, %s6
  %s9 = scalar_select 0, %s8, %s6
  $region1: #{merge_block_forward.1} parent=0
    #allocation2 [shape = 'u8[131072]{0}', space=vmem, size = 0x20000, scoped, tag = 'input window, operand 2']
    #allocation3 [shape = 's32[2]{0}', space=sflag, size = 0x8, scoped, tag = 'scoped memory for merge_block_forward.1']
    #allocation4 [shape = 'u8[65536]{0}', space=vmem, size = 0x10000, scoped, tag = 'input window, operand 3']
    #allocation5 [shape = 's32[2]{0}', space=sflag, size = 0x8, scoped, tag = 'scoped memory for merge_block_forward.1']
    %10 = vsyncpa [#allocation3], 0
    %s11 = scalar_lea.sflag [#allocation3], 1
    %12 = vsyncpa %s11, 0
    %13 = vsyncpa [#allocation5], 0
    %s14 = scalar_lea.sflag [#allocation5], 1
    %15 = vsyncpa %s14, 0
    loop: start=0, step=1, limit=4
    $region2: #{merge_block_forward.1} parent=1 // loop_pre_header
      _
    $region3: #{merge_block_forward.1} parent=1 // loop_header
      %s17 = sphi 0, %s21
      %p18 = scmp.ge.s32.totalorder %s17, 4
      %s25 = sphi 0, %s25
      %s27 = sphi 0, %s25
      %s28 = sphi 0, %s27
      %s42 = sphi 0, %s28
      %s46 = sphi 0, %s46
      %s48 = sphi 0, %s46
      %s49 = sphi 0, %s48
      %s63 = sphi 0, %s49
      %s69 = sphi 0, %s71
      %s72 = sphi 0, %s69
      %s73 = sphi 0, %s72
      %s89 = sphi 0, %s73
      %s95 = sphi 0, %s97
      %s98 = sphi 0, %s95
      %s99 = sphi 0, %s98
      %s115 = sphi 0, %s99
      %s121 = sphi 0, %s123
      %s124 = sphi 0, %s121
      %s125 = sphi 0, %s124
      %s141 = sphi 0, %s125
      %s147 = sphi 0, %s149
      %s150 = sphi 0, %s147
      %s151 = sphi 0, %s150
      %s167 = sphi 0, %s151
    $region4: #{merge_block_forward.1} parent=1 // loop_header_branch
      %20 = sbr.rel (%p18) target = $region8
    $region5: #{merge_block_forward.1} parent=1 // loop_body
      %s22 = ssub.s32 %s17, 1
      %s23 = ssub.s32 %s17, 2
      %s24 = sadd.s32 %s17, 1
      %s26 = sadd.s32 %s25, 1
      %p29 = scmp.eq.s32.totalorder %s17, 1
      %p30 = scmp.ne.s32.totalorder %s25, %s27
      %p31 = scmp.eq.s32.totalorder %s17, 0
      %p32 = por %p30, %p31
      %p33 = scmp.ne.s32.totalorder %s25, %s27
      %p34 = scmp.eq.s32.totalorder %s22, 1
      %p35 = por %p33, %p34
      %p36 = scmp.ne.s32.totalorder %s27, %s28
      %p37 = scmp.eq.s32.totalorder %s22, 0
      %p38 = por %p36, %p37
      %p39 = scmp.ne.s32.totalorder %s27, %s28
      %p40 = scmp.eq.s32.totalorder %s23, 1
      %p41 = por %p39, %p40
      %p43 = scmp.ne.s32.totalorder %s28, %s42
      %p44 = scmp.eq.s32.totalorder %s23, 0
      %p45 = por %p43, %p44
      %s47 = sadd.s32 %s46, 1
      %p50 = scmp.eq.s32.totalorder %s17, 1
      %p51 = scmp.ne.s32.totalorder %s46, %s48
      %p52 = scmp.eq.s32.totalorder %s17, 0
      %p53 = por %p51, %p52
      %p54 = scmp.ne.s32.totalorder %s46, %s48
      %p55 = scmp.eq.s32.totalorder %s22, 1
      %p56 = por %p54, %p55
      %p57 = scmp.ne.s32.totalorder %s48, %s49
      %p58 = scmp.eq.s32.totalorder %s22, 0
      %p59 = por %p57, %p58
      %p60 = scmp.ne.s32.totalorder %s48, %s49
      %p61 = scmp.eq.s32.totalorder %s23, 1
      %p62 = por %p60, %p61
      %p64 = scmp.ne.s32.totalorder %s49, %s63
      %p65 = scmp.eq.s32.totalorder %s23, 0
      %p66 = por %p64, %p65
      %s67 = ssub.s32 %s17, %s24
      %p68 = scmp.eq.s32.totalorder %s67, 0
      %s70 = sadd.s32 %s69, 1
      %s71 = scalar_select %p68, %s69, %s70
      %p74 = pneg %p68
      %p75 = scmp.eq.s32.totalorder %s17, 1
      %p76 = por %p74, %p75
      %p77 = scmp.ne.s32.totalorder %s69, %s72
      %p78 = scmp.eq.s32.totalorder %s17, 0
      %p79 = por %p77, %p78
      %p80 = scmp.ne.s32.totalorder %s69, %s72
      %p81 = scmp.eq.s32.totalorder %s22, 1
      %p82 = por %p80, %p81
      %p83 = scmp.ne.s32.totalorder %s72, %s73
      %p84 = scmp.eq.s32.totalorder %s22, 0
      %p85 = por %p83, %p84
      %p86 = scmp.ne.s32.totalorder %s72, %s73
      %p87 = scmp.eq.s32.totalorder %s23, 1
      %p88 = por %p86, %p87
      %p90 = scmp.ne.s32.totalorder %s73, %s89
      %p91 = scmp.eq.s32.totalorder %s23, 0
      %p92 = por %p90, %p91
      %s93 = ssub.s32 %s17, %s24
      %p94 = scmp.eq.s32.totalorder %s93, 0
      %s96 = sadd.s32 %s95, 1
      %s97 = scalar_select %p94, %s95, %s96
      %p100 = pneg %p94
      %p101 = scmp.eq.s32.totalorder %s17, 1
      %p102 = por %p100, %p101
      %p103 = scmp.ne.s32.totalorder %s95, %s98
      %p104 = scmp.eq.s32.totalorder %s17, 0
      %p105 = por %p103, %p104
      %p106 = scmp.ne.s32.totalorder %s95, %s98
      %p107 = scmp.eq.s32.totalorder %s22, 1
      %p108 = por %p106, %p107
      %p109 = scmp.ne.s32.totalorder %s98, %s99
      %p110 = scmp.eq.s32.totalorder %s22, 0
      %p111 = por %p109, %p110
      %p112 = scmp.ne.s32.totalorder %s98, %s99
      %p113 = scmp.eq.s32.totalorder %s23, 1
      %p114 = por %p112, %p113
      %p116 = scmp.ne.s32.totalorder %s99, %s115
      %p117 = scmp.eq.s32.totalorder %s23, 0
      %p118 = por %p116, %p117
      %s119 = ssub.s32 %s17, %s24
      %p120 = scmp.eq.s32.totalorder %s119, 0
      %s122 = sadd.s32 %s121, 1
      %s123 = scalar_select %p120, %s121, %s122
      %p126 = pneg %p120
      %p127 = scmp.eq.s32.totalorder %s17, 1
      %p128 = por %p126, %p127
      %p129 = scmp.ne.s32.totalorder %s121, %s124
      %p130 = scmp.eq.s32.totalorder %s17, 0
      %p131 = por %p129, %p130
      %p132 = scmp.ne.s32.totalorder %s121, %s124
      %p133 = scmp.eq.s32.totalorder %s22, 1
      %p134 = por %p132, %p133
      %p135 = scmp.ne.s32.totalorder %s124, %s125
      %p136 = scmp.eq.s32.totalorder %s22, 0
      %p137 = por %p135, %p136
      %p138 = scmp.ne.s32.totalorder %s124, %s125
      %p139 = scmp.eq.s32.totalorder %s23, 1
      %p140 = por %p138, %p139
      %p142 = scmp.ne.s32.totalorder %s125, %s141
      %p143 = scmp.eq.s32.totalorder %s23, 0
      %p144 = por %p142, %p143
      %s145 = ssub.s32 %s17, %s24
      %p146 = scmp.eq.s32.totalorder %s145, 0
      %s148 = sadd.s32 %s147, 1
      %s149 = scalar_select %p146, %s147, %s148
      %p152 = pneg %p146
      %p153 = scmp.eq.s32.totalorder %s17, 1
      %p154 = por %p152, %p153
      %p155 = scmp.ne.s32.totalorder %s147, %s150
      %p156 = scmp.eq.s32.totalorder %s17, 0
      %p157 = por %p155, %p156
      %p158 = scmp.ne.s32.totalorder %s147, %s150
      %p159 = scmp.eq.s32.totalorder %s22, 1
      %p160 = por %p158, %p159
      %p161 = scmp.ne.s32.totalorder %s150, %s151
      %p162 = scmp.eq.s32.totalorder %s22, 0
      %p163 = por %p161, %p162
      %p164 = scmp.ne.s32.totalorder %s150, %s151
      %p165 = scmp.eq.s32.totalorder %s23, 1
      %p166 = por %p164, %p165
      %p168 = scmp.ne.s32.totalorder %s151, %s167
      %p169 = scmp.eq.s32.totalorder %s23, 0
      %p170 = por %p168, %p169
      %p171 = scmp.le.s32.totalorder 1, %s17
      %p172 = scmp.lt.s32.totalorder %s17, 3
      %p173 = pnand %p171, %p172
      %p174 = pneg %p173
      // Predicated region
      $region9: #{merge_block_forward.1} parent=5 // pred_check
        _
      $region10: #{merge_block_forward.1} parent=5 // pred_check_branch
        %176 = sbr.rel (%p173) target = $region12
      $region11: #{merge_block_forward.1} parent=5 // pred_region
        %s177 = ssub.s32 %s17, 1
        // Predicated region
        $region13: #{merge_block_forward.1} parent=11 // pred_check
          %p178 = pneg %p38
        $region14: #{merge_block_forward.1} parent=11 // pred_check_branch
          %180 = sbr.rel (%p178) target = $region16
        $region15: #{merge_block_forward.1} parent=11 // pred_region
          _
        $region16: #{merge_block_forward.1} parent=11 // pred_fallthru
          _
        // Predicated region
        $region17: #{merge_block_forward.1} parent=11 // pred_check
          %p181 = pneg %p59
        $region18: #{merge_block_forward.1} parent=11 // pred_check_branch
          %183 = sbr.rel (%p181) target = $region20
        $region19: #{merge_block_forward.1} parent=11 // pred_region
          _
        $region20: #{merge_block_forward.1} parent=11 // pred_fallthru
          _
      $region12: #{merge_block_forward.1} parent=5 // pred_fallthru
        _
      %p184 = scmp.lt.s32.totalorder %s17, 2
      // Predicated region
      $region21: #{merge_block_forward.1} parent=5 // pred_check
        %p185 = pneg %p184
      $region22: #{merge_block_forward.1} parent=5 // pred_check_branch
        %187 = sbr.rel (%p185) target = $region24
      $region23: #{merge_block_forward.1} parent=5 // pred_region
        // Predicated region
        $region25: #{merge_block_forward.1} parent=23 // pred_check
          %p188 = pneg %p79
        $region26: #{merge_block_forward.1} parent=23 // pred_check_branch
          %190 = sbr.rel (%p188) target = $region28
        $region27: #{merge_block_forward.1} parent=23 // pred_region
          %s191 = sand.u32 %s69, 1
          %s192 = scalar_lea.sflag [#allocation3], %s191
          %s193 = sand.u32 %s69, 1
          %s194 = smul.addr %s193, 128
          %s195 = scalar_lea.vmem [#allocation2], %s194
          %s197 = ssub.s32 2048, 2048
          %198 = vsyncadd %s192, %s197
          %s199 = smul.addr %s17, 64
          %s200 = scalar_lea.hbm %s2, %s199
          %s201 = sshll.u32 %s195, 4
          %s202 = int_to_ptr.vmem [resolvable:$true] %s201
          %207 = dma.hbm_to_vmem [thread:$0]  %s200, 2048, %s202, %s192, 128, 64, 4
        $region28: #{merge_block_forward.1} parent=23 // pred_fallthru
          _
        // Predicated region
        $region29: #{merge_block_forward.1} parent=23 // pred_check
          %p208 = pneg %p105
        $region30: #{merge_block_forward.1} parent=23 // pred_check_branch
          %210 = sbr.rel (%p208) target = $region32
        $region31: #{merge_block_forward.1} parent=23 // pred_region
          %s211 = sand.u32 %s95, 1
          %s212 = scalar_lea.sflag [#allocation5], %s211
          %s213 = sand.u32 %s95, 1
          %s214 = smul.addr %s213, 64
          %s215 = scalar_lea.vmem [#allocation4], %s214
          %s217 = ssub.s32 1024, 1024
          %218 = vsyncadd %s212, %s217
          %s219 = smul.addr %s17, 64
          %s220 = scalar_lea.hbm %s3, %s219
          %s221 = sshll.u32 %s215, 4
          %s222 = int_to_ptr.vmem [resolvable:$true] %s221
          %227 = dma.hbm_to_vmem [thread:$0]  %s220, 1024, %s222, %s212, 128, 64, 4
        $region32: #{merge_block_forward.1} parent=23 // pred_fallthru
          _
        // Predicated region
        $region33: #{merge_block_forward.1} parent=23 // pred_check
          %p228 = pneg %p131
        $region34: #{merge_block_forward.1} parent=23 // pred_check_branch
          %230 = sbr.rel (%p228) target = $region36
        $region35: #{merge_block_forward.1} parent=23 // pred_region
          %p231 = scmp.lt.s32.totalorder %s17, 1
          %s232 = scalar_select %p231, %s17, 1
          %s233 = scalar_lea.vmem %s4, %s232
        $region36: #{merge_block_forward.1} parent=23 // pred_fallthru
          _
      $region24: #{merge_block_forward.1} parent=5 // pred_fallthru
        _
      %p234 = scmp.le.s32.totalorder 1, %s17
      %p235 = scmp.lt.s32.totalorder %s17, 3
      %p236 = pnand %p234, %p235
      %p237 = pneg %p236
      // Predicated region
      $region37: #{merge_block_forward.1} parent=5 // pred_check
        _
      $region38: #{merge_block_forward.1} parent=5 // pred_check_branch
        %239 = sbr.rel (%p236) target = $region40
      $region39: #{merge_block_forward.1} parent=5 // pred_region
        %s240 = ssub.s32 %s17, 1
        %s241 = sand.u32 %s72, 1
        %s242 = scalar_lea.sflag [#allocation3], %s241
        %s243 = sand.u32 %s72, 1
        %s244 = smul.addr %s243, 128
        %s245 = scalar_lea.vmem [#allocation2], %s244
        // Predicated region
        $region41: #{merge_block_forward.1} parent=39 // pred_check
          %p246 = pneg %p85
        $region42: #{merge_block_forward.1} parent=39 // pred_check_branch
          %248 = sbr.rel (%p246) target = $region44
        $region43: #{merge_block_forward.1} parent=39 // pred_region
          %249 = dma.done %s242, 2048
        $region44: #{merge_block_forward.1} parent=39 // pred_fallthru
          _
        %s250 = sand.u32 %s98, 1
        %s251 = scalar_lea.sflag [#allocation5], %s250
        %s252 = sand.u32 %s98, 1
        %s253 = smul.addr %s252, 64
        %s254 = scalar_lea.vmem [#allocation4], %s253
        // Predicated region
        $region45: #{merge_block_forward.1} parent=39 // pred_check
          %p255 = pneg %p111
        $region46: #{merge_block_forward.1} parent=39 // pred_check_branch
          %257 = sbr.rel (%p255) target = $region48
        $region47: #{merge_block_forward.1} parent=39 // pred_region
          %258 = dma.done %s251, 1024
        $region48: #{merge_block_forward.1} parent=39 // pred_fallthru
          _
        %p259 = pneg %p38
        %p260 = pneg %p35
        %p261 = pneg %p59
        %p262 = pneg %p56
        %s263 = sand.u32 %s72, 1
        %s264 = scalar_lea.sflag [#allocation3], %s263
        %s265 = sand.u32 %s72, 1
        %s266 = smul.addr %s265, 128
        %s267 = scalar_lea.vmem [#allocation2], %s266
        %p268 = pneg %p85
        %p269 = pneg %p82
        %s270 = sand.u32 %s98, 1
        %s271 = scalar_lea.sflag [#allocation5], %s270
        %s272 = sand.u32 %s98, 1
        %s273 = smul.addr %s272, 64
        %s274 = scalar_lea.vmem [#allocation4], %s273
        %p275 = pneg %p111
        %p276 = pneg %p108
        %p277 = scmp.lt.s32.totalorder %s22, 1
        %s278 = scalar_select %p277, %s22, 1
        %s279 = scalar_lea.vmem %s4, %s278
        %p280 = pneg %p137
        %p281 = pneg %p134
        %p282 = pneg %p163
        %p283 = pneg %p160
        %p284 = scmp.lt.s32.totalorder %s22, 1
        %s285 = scalar_select %p284, %s22, 1
        %s286 = smul.addr %s285, 2
        %s287 = scalar_lea.vmem %s5, %s286
        %p288 = scmp.lt.s32.totalorder %s22, 1
        %s289 = scalar_select %p288, %s22, 1
        %s290 = scalar_lea.vmem %s4, %s289
        %p291 = scmp.lt.s32.totalorder %s22, 1
        %s292 = scalar_select %p291, %s22, 1
        %s293 = smul.addr %s292, 2
        %s294 = scalar_lea.vmem %s5, %s293
        %v296 = vld [vmem:[%s0] sm:$0xf]
        %v299 = vunpack.c.l.s4 1983009808
        %v300 = vunpack.c.0.s8 %v299
        %v301 = vlaneseq
        %v302 = vshrl.u32 %v301, 7
        %v303 = vsub.s32 %v300, %v302
        %v304 = vrot.slane %v296, %v303
        %v305 = vcombine.high %v304, %v304
        %v308 = vpack.c.bf16 %v304, %v304
        %v309 = vpack.c.bf16 %v305, %v305
        %v310 = vld [vmem:[%s1] sm:$0x3]
        %v311 = vpack.c.bf16 %v310, %v310
        %v312 = vld [vmem:[%s245] sm:$0xf]
        %v313 = vld [vmem:[%s245 + $0x4] sm:$0xf]
        %v314 = vld [vmem:[%s245 + $0x8] sm:$0xf]
        %v315 = vld [vmem:[%s245 + $0xc] sm:$0xf]
        %v316 = vld [vmem:[%s245 + $0x10] sm:$0xf]
        %v317 = vld [vmem:[%s245 + $0x14] sm:$0xf]
        %v318 = vld [vmem:[%s245 + $0x18] sm:$0xf]
        %v319 = vld [vmem:[%s245 + $0x1c] sm:$0xf]
        %v320 = vld [vmem:[%s245 + $0x20] sm:$0xf]
        %v321 = vld [vmem:[%s245 + $0x24] sm:$0xf]
        %v322 = vld [vmem:[%s245 + $0x28] sm:$0xf]
        %v323 = vld [vmem:[%s245 + $0x2c] sm:$0xf]
        %v324 = vld [vmem:[%s245 + $0x30] sm:$0xf]
        %v325 = vld [vmem:[%s245 + $0x34] sm:$0xf]
        %v326 = vld [vmem:[%s245 + $0x38] sm:$0xf]
        %v327 = vld [vmem:[%s245 + $0x3c] sm:$0xf]
        %v328 = vld [vmem:[%s245 + $0x40] sm:$0xf]
        %v329 = vld [vmem:[%s245 + $0x44] sm:$0xf]
        %v330 = vld [vmem:[%s245 + $0x48] sm:$0xf]
        %v331 = vld [vmem:[%s245 + $0x4c] sm:$0xf]
        %v332 = vld [vmem:[%s245 + $0x50] sm:$0xf]
        %v333 = vld [vmem:[%s245 + $0x54] sm:$0xf]
        %v334 = vld [vmem:[%s245 + $0x58] sm:$0xf]
        %v335 = vld [vmem:[%s245 + $0x5c] sm:$0xf]
        %v336 = vld [vmem:[%s245 + $0x60] sm:$0xf]
        %v337 = vld [vmem:[%s245 + $0x64] sm:$0xf]
        %v338 = vld [vmem:[%s245 + $0x68] sm:$0xf]
        %v339 = vld [vmem:[%s245 + $0x6c] sm:$0xf]
        %v340 = vld [vmem:[%s245 + $0x70] sm:$0xf]
        %v341 = vld [vmem:[%s245 + $0x74] sm:$0xf]
        %v342 = vld [vmem:[%s245 + $0x78] sm:$0xf]
        %v343 = vld [vmem:[%s245 + $0x7c] sm:$0xf]
        %v344 = vld [vmem:[%s254] sm:$0xf]
        %v345 = vld [vmem:[%s254 + $0x4] sm:$0xf]
        %v346 = vld [vmem:[%s254 + $0x8] sm:$0xf]
        %v347 = vld [vmem:[%s254 + $0xc] sm:$0xf]
        %v348 = vld [vmem:[%s254 + $0x10] sm:$0xf]
        %v349 = vld [vmem:[%s254 + $0x14] sm:$0xf]
        %v350 = vld [vmem:[%s254 + $0x18] sm:$0xf]
        %v351 = vld [vmem:[%s254 + $0x1c] sm:$0xf]
        %v352 = vld [vmem:[%s254 + $0x20] sm:$0xf]
        %v353 = vld [vmem:[%s254 + $0x24] sm:$0xf]
        %v354 = vld [vmem:[%s254 + $0x28] sm:$0xf]
        %v355 = vld [vmem:[%s254 + $0x2c] sm:$0xf]
        %v356 = vld [vmem:[%s254 + $0x30] sm:$0xf]
        %v357 = vld [vmem:[%s254 + $0x34] sm:$0xf]
        %v358 = vld [vmem:[%s254 + $0x38] sm:$0xf]
        %v359 = vld [vmem:[%s254 + $0x3c] sm:$0xf]
        %v376 = vunpack.c.l.b16 %v344
        %v377 = vunpack.c.l.b16 %v345
        %v378 = vunpack.c.l.b16 %v346
        %v379 = vunpack.c.l.b16 %v347
        %v380 = vunpack.c.l.b16 %v348
        %v381 = vunpack.c.l.b16 %v349
        %v382 = vunpack.c.l.b16 %v350
        %v383 = vunpack.c.l.b16 %v351
        %v384 = vunpack.c.l.b16 %v352
        %v385 = vunpack.c.l.b16 %v353
        %v386 = vunpack.c.l.b16 %v354
        %v387 = vunpack.c.l.b16 %v355
        %v388 = vunpack.c.l.b16 %v356
        %v389 = vunpack.c.l.b16 %v357
        %v390 = vunpack.c.l.b16 %v358
        %v391 = vunpack.c.l.b16 %v359
        %v392 = vpack.c.b16 %v377, %v376
        %v393 = vpack.c.b16 %v379, %v378
        %v394 = vpack.c.b16 %v381, %v380
        %v395 = vpack.c.b16 %v383, %v382
        %v396 = vpack.c.b16 %v385, %v384
        %v397 = vpack.c.b16 %v387, %v386
        %v398 = vpack.c.b16 %v389, %v388
        %v399 = vpack.c.b16 %v391, %v390
        %408 = vmatprep.subr.bf16.mxu0 0
        %409 = vmatpush1.bf16.msra.mxu0 %v392
        %410 = vmatprep.subr.bf16.mxu0 0
        %411 = vmatpush1.bf16.msra.mxu0 %v393
        %412 = vmatprep.subr.bf16.mxu0 0
        %413 = vmatpush1.bf16.msra.mxu0 %v394
        %414 = vmatprep.subr.bf16.mxu0 0
        %415 = vmatpush1.bf16.msra.mxu0 %v395
        %416 = vmatprep.subr.bf16.mxu0 0
        %417 = vmatpush1.bf16.msra.mxu0 %v396
        %418 = vmatprep.subr.bf16.mxu0 0
        %419 = vmatpush1.bf16.msra.mxu0 %v397
        %420 = vmatprep.subr.bf16.mxu0 0
        %421 = vmatpush1.bf16.msra.mxu0 %v398
        %422 = vmatprep.subr.bf16.mxu0 0
        %423 = vmatpush1.bf16.msra.mxu0 %v399
        %424 = vmatprep.subr.bf16.mxu0 0
        %425 = vmatpush1.bf16.msra.mxu0 0
        %426 = vmatprep.subr.bf16.mxu0 0
        %427 = vmatpush1.bf16.msra.mxu0 0
        %428 = vmatprep.subr.bf16.mxu0 0
        %429 = vmatpush1.bf16.msra.mxu0 0
        %430 = vmatprep.subr.bf16.mxu0 0
        %431 = vmatpush1.bf16.msra.mxu0 0
        %432 = vmatprep.subr.bf16.mxu0 0
        %433 = vmatpush1.bf16.msra.mxu0 0
        %434 = vmatprep.subr.bf16.mxu0 0
        %435 = vmatpush1.bf16.msra.mxu0 0
        %436 = vmatprep.subr.bf16.mxu0 0
        %437 = vmatpush1.bf16.msra.mxu0 0
        %438 = vmatprep.subr.bf16.mxu0 0
        %439 = vmatpush1.bf16.msra.mxu0 0
        %440 = vmatprep.mubr.bf16.mxu0 0
        %441 = vmatmul.mubr.bf16.gmra.mrb[0].mxu0 %v311
        %v442 = vpop.f32.mrb[0].mxu0
        %v443 = vadd.f32 0.0, %v442
        %v444 = vpop.f32.mrb[0].mxu0
        %v445 = vpop.f32.mrb[0].mxu0
        %v446 = vpop.f32.mrb[0].mxu0
        %447 = vdwg.mxu0
        %v480 = vunpack.c.l.b16 %v312
        %v481 = vunpack.c.l.b16 %v313
        %v482 = vunpack.c.l.b16 %v314
        %v483 = vunpack.c.l.b16 %v315
        %v484 = vunpack.c.l.b16 %v316
        %v485 = vunpack.c.l.b16 %v317
        %v486 = vunpack.c.l.b16 %v318
        %v487 = vunpack.c.l.b16 %v319
        %v488 = vunpack.c.l.b16 %v320
        %v489 = vunpack.c.l.b16 %v321
        %v490 = vunpack.c.l.b16 %v322
        %v491 = vunpack.c.l.b16 %v323
        %v492 = vunpack.c.l.b16 %v324
        %v493 = vunpack.c.l.b16 %v325
        %v494 = vunpack.c.l.b16 %v326
        %v495 = vunpack.c.l.b16 %v327
        %v496 = vunpack.c.l.b16 %v328
        %v497 = vunpack.c.l.b16 %v329
        %v498 = vunpack.c.l.b16 %v330
        %v499 = vunpack.c.l.b16 %v331
        %v500 = vunpack.c.l.b16 %v332
        %v501 = vunpack.c.l.b16 %v333
        %v502 = vunpack.c.l.b16 %v334
        %v503 = vunpack.c.l.b16 %v335
        %v504 = vunpack.c.l.b16 %v336
        %v505 = vunpack.c.l.b16 %v337
        %v506 = vunpack.c.l.b16 %v338
        %v507 = vunpack.c.l.b16 %v339
        %v508 = vunpack.c.l.b16 %v340
        %v509 = vunpack.c.l.b16 %v341
        %v510 = vunpack.c.l.b16 %v342
        %v511 = vunpack.c.l.b16 %v343
        %v512 = vpack.c.b16 %v481, %v480
        %v513 = vpack.c.b16 %v483, %v482
        %v514 = vpack.c.b16 %v485, %v484
        %v515 = vpack.c.b16 %v487, %v486
        %v516 = vpack.c.b16 %v489, %v488
        %v517 = vpack.c.b16 %v491, %v490
        %v518 = vpack.c.b16 %v493, %v492
        %v519 = vpack.c.b16 %v495, %v494
        %v520 = vpack.c.b16 %v497, %v496
        %v521 = vpack.c.b16 %v499, %v498
        %v522 = vpack.c.b16 %v501, %v500
        %v523 = vpack.c.b16 %v503, %v502
        %v524 = vpack.c.b16 %v505, %v504
        %v525 = vpack.c.b16 %v507, %v506
        %v526 = vpack.c.b16 %v509, %v508
        %v527 = vpack.c.b16 %v511, %v510
        %544 = vmatprep.subr.bf16.mxu0 0
        %545 = vmatpush1.bf16.msra.mxu0 %v512
        %546 = vmatprep.subr.bf16.mxu0 0
        %547 = vmatpush1.bf16.msra.mxu0 %v513
        %548 = vmatprep.subr.bf16.mxu0 0
        %549 = vmatpush1.bf16.msra.mxu0 %v514
        %550 = vmatprep.subr.bf16.mxu0 0
        %551 = vmatpush1.bf16.msra.mxu0 %v515
        %552 = vmatprep.subr.bf16.mxu0 0
        %553 = vmatpush1.bf16.msra.mxu0 %v516
        %554 = vmatprep.subr.bf16.mxu0 0
        %555 = vmatpush1.bf16.msra.mxu0 %v517
        %556 = vmatprep.subr.bf16.mxu0 0
        %557 = vmatpush1.bf16.msra.mxu0 %v518
        %558 = vmatprep.subr.bf16.mxu0 0
        %559 = vmatpush1.bf16.msra.mxu0 %v519
        %560 = vmatprep.subr.bf16.mxu0 0
        %561 = vmatpush1.bf16.msra.mxu0 %v520
        %562 = vmatprep.subr.bf16.mxu0 0
        %563 = vmatpush1.bf16.msra.mxu0 %v521
        %564 = vmatprep.subr.bf16.mxu0 0
        %565 = vmatpush1.bf16.msra.mxu0 %v522
        %566 = vmatprep.subr.bf16.mxu0 0
        %567 = vmatpush1.bf16.msra.mxu0 %v523
        %568 = vmatprep.subr.bf16.mxu0 0
        %569 = vmatpush1.bf16.msra.mxu0 %v524
        %570 = vmatprep.subr.bf16.mxu0 0
        %571 = vmatpush1.bf16.msra.mxu0 %v525
        %572 = vmatprep.subr.bf16.mxu0 0
        %573 = vmatpush1.bf16.msra.mxu0 %v526
        %574 = vmatprep.subr.bf16.mxu0 0
        %575 = vmatpush1.bf16.msra.mxu0 %v527
        %576 = vmatprep.mubr.bf16.mxu0 %v309
        %577 = vmatmul.mubr.bf16.gmra.mrb[0].mxu0 %v308
        %v578 = vpop.f32.mrb[0].mxu0
        %v579 = vadd.f32 %v443, %v578
        %v580 = vpop.f32.mrb[0].mxu0
        %v581 = vpop.f32.mrb[0].mxu0
        %v582 = vpop.f32.mrb[0].mxu0
        %583 = vdwg.mxu0
        %v584 = vld [vmem:[%s290] sm:$0x1]
        %v586 = vlaneseq
        %v587 = vshrl.u32 %v586, 7
        %v588 = vsub.s32 0, %v587
        %v589 = vrot.slane %v584, %v588
        %v591 = vadd.f32 %v579, %v589
        %v592 = vmax.f32 %v591, 0.0
        %593 = vst [vmem:[%s294] sm:$0x3] %v592
        %p594 = scmp.lt.s32.totalorder %s22, 1
        %s595 = scalar_select %p594, %s22, 1
        %s596 = smul.addr %s595, 2
        %s597 = scalar_lea.vmem %s5, %s596
        // Predicated region
        $region49: #{merge_block_forward.1} parent=39 // pred_check
          %p598 = pneg %p160
        $region50: #{merge_block_forward.1} parent=39 // pred_check_branch
          %600 = sbr.rel (%p598) target = $region52
        $region51: #{merge_block_forward.1} parent=39 // pred_region
          _
        $region52: #{merge_block_forward.1} parent=39 // pred_fallthru
          _
      $region40: #{merge_block_forward.1} parent=5 // pred_fallthru
        _
      %p601 = scmp.le.s32.totalorder 2, %s17
      // Predicated region
      $region53: #{merge_block_forward.1} parent=5 // pred_check
        %p602 = pneg %p601
      $region54: #{merge_block_forward.1} parent=5 // pred_check_branch
        %604 = sbr.rel (%p602) target = $region56
      $region55: #{merge_block_forward.1} parent=5 // pred_region
        %s605 = ssub.s32 %s17, 2
        // Predicated region
        $region57: #{merge_block_forward.1} parent=55 // pred_check
          %p606 = pneg %p166
        $region58: #{merge_block_forward.1} parent=55 // pred_check_branch
          %608 = sbr.rel (%p606) target = $region60
        $region59: #{merge_block_forward.1} parent=55 // pred_region
          %p609 = scmp.lt.s32.totalorder %s23, 1
          %s610 = scalar_select %p609, %s23, 1
          %s611 = smul.addr %s610, 2
          %s612 = scalar_lea.vmem %s5, %s611
        $region60: #{merge_block_forward.1} parent=55 // pred_fallthru
          _
      $region56: #{merge_block_forward.1} parent=5 // pred_fallthru
        _
    $region6: #{merge_block_forward.1} parent=1 // loop_footer
      %s21 = sadd.s32 1, %s17
    $region7: #{merge_block_forward.1} parent=1 // loop_footer_branch
      %16 = sbr.rel target = $region3
    $region8: #{merge_block_forward.1} parent=1 // loop_exit
      _
    %613 = vsyncpa [#allocation3], 1
    %s614 = scalar_lea.sflag [#allocation3], 1
    %615 = vsyncpa %s614, 1
    %616 = vsyncpa [#allocation5], 1
    %s617 = scalar_lea.sflag [#allocation5], 1
    %618 = vsyncpa %s617, 1

</llo_original>
